<compile_context>
chip_gen: v7x
topology: tpu7x:2x2x1
jax: 0.10.0
libtpu: 0.0.40
codegen_flags: <defaults>
</compile_context>

<pallas_src>
import math

import jax
import jax.numpy as jnp
from jax.experimental import pallas as pl
from jax.experimental.pallas import tpu as pltpu

_LANE = 128
_MAX_FOLD = 256          # lane-tile groups per block -> c_tile <= 32768 columns


def _round_up(x, m):
    return (x + m - 1) // m * m


# --------------------------------------------------------------------------- #
# Chip detection (TensorCores per chip, physical VMEM) with safe fallbacks.
# --------------------------------------------------------------------------- #
_CHIP_CFG = None


def _chip_config():
    global _CHIP_CFG
    if _CHIP_CFG is not None:
        return _CHIP_CFG
    ncores = 1
    vmem_phys = 128 * 1024 * 1024
    try:
        info = pltpu.get_tpu_info()
        for name in ("vmem_capacity_bytes", "vmem_bytes", "vmem_capacity"):
            v = getattr(info, name, None)
            if v:
                vmem_phys = int(v)
                break
        for name in ("num_tensorcores", "tensorcores_per_chip",
                     "tensor_cores_per_chip", "num_cores", "cores_per_chip"):
            c = getattr(info, name, None)
            if c:
                ncores = int(c)
                break
    except Exception:
        pass
    try:
        kind = jax.devices()[0].device_kind.lower().replace(" ", "")
        if "v7" in kind or kind.startswith("tpu7"):
            ncores = max(ncores, 2)
            vmem_phys = min(vmem_phys, 64 * 1024 * 1024)
    except Exception:
        pass
    _CHIP_CFG = (ncores, vmem_phys)
    return _CHIP_CFG


# --------------------------------------------------------------------------- #
# Encoder loss: mean(|embedded - original_signal|), tiled streaming reduction.
# --------------------------------------------------------------------------- #
def _choose_col_tiling(C, c_tile_cap, ncores):
    """Pick (c_tile, ncores_eff, steps): c_tile multiple of 128, <= C//128*128."""
    cap = max(_LANE, min(c_tile_cap, (C // _LANE) * _LANE))
    c_tile = cap
    nb = pl.cdiv(C, c_tile)
    if ncores > 1 and nb % ncores != 0:
        nb_target = _round_up(nb, ncores)
        c_try = _round_up(pl.cdiv(C, nb_target), _LANE)
        if _LANE <= c_try <= cap and pl.cdiv(C, c_try) % ncores == 0:
            c_tile = c_try
            nb = pl.cdiv(C, c_tile)
        else:
            ncores = 1
    return c_tile, ncores, nb // ncores


def _make_l1_kernel(R, c_tile, rem_c):
    fold = c_tile // _LANE

    def _fold_lanes(x):
        # (R, c_tile) -> (R, 128): pairwise-add lane-tile groups.  Slices are on
        # exact 128-lane boundaries (layout-aligned, VALU-only add tree).
        parts = [x[:, k * _LANE:(k + 1) * _LANE] for k in range(fold)]
        while len(parts) > 1:
            nxt = [parts[j] + parts[j + 1] for j in range(0, len(parts) - 1, 2)]
            if len(parts) % 2:
                nxt.append(parts[-1])
            parts = nxt
        return parts[0]

    def kernel(a_ref, b_ref, out_ref, acc_ref):
        c = pl.program_id(0)
        i = pl.program_id(1)

        @pl.when(i == 0)
        def _init():
            acc_ref[...] = jnp.zeros_like(acc_ref)

        # Upcast inside the kernel (bf16 stays bf16 over HBM; v5e-safe math).
        a = a_ref[...].astype(jnp.float32)
        b = b_ref[...].astype(jnp.float32)
        diff = jnp.abs(a - b)                       # (R, c_tile) f32

        def _accum(x):
            acc_ref[...] += _fold_lanes(x)

        if rem_c != c_tile:
            # Last (boundary) block has garbage beyond column rem_c: mask it.
            is_last = jnp.logical_and(c == pl.num_programs(0) - 1,
                                      i == pl.num_programs(1) - 1)

            @pl.when(is_last)
            def _masked():
                col = jax.lax.broadcasted_iota(jnp.int32, (R, c_tile), 1)
                _accum(jnp.where(col < rem_c, diff, 0.0))

            @pl.when(jnp.logical_not(is_last))
            def _full():
                _accum(diff)
        else:
            _accum(diff)

        @pl.when(i == pl.num_programs(1) - 1)
        def _finalize():
            # Single sublane reduce per core; cross-lane finish in the wrapper.
            out_ref[...] = jnp.sum(acc_ref[...], axis=0, keepdims=True)

    return kernel


def _l1_mean_pallas(a, b):
    """mean(|a - b|) over same-shaped float tensors (f32 or bf16)."""
    assert a.shape == b.shape, (a.shape, b.shape)
    C = int(a.shape[-1])
    R = int(math.prod(a.shape[:-1])) if a.ndim > 1 else 1
    n = R * C

    ncores, vmem_phys = _chip_config()
    itemsize = jnp.dtype(a.dtype).itemsize
    budget = min(48 * 1024 * 1024, vmem_phys // 2)      # v7x: 32 MiB, else 48 MiB
    bytes_per_col = _round_up(R, 8) * itemsize           # VMEM bytes per block column

    # Tiny / pathological cases: plain jnp (fused by XLA), no kernel launch.
    if C < _LANE or n == 0 or bytes_per_col * _LANE * 4 > budget:
        return jnp.mean(jnp.abs(a.astype(jnp.float32) - b.astype(jnp.float32)))

    # Collapse leading dims (contiguous -> free bitcast under jit).
    a2 = a.reshape(R, C)
    b2 = b.reshape(R, C)

    max_block_bytes = budget // 4                        # 2 inputs x double buffer
    c_cap = min(_MAX_FOLD * _LANE,
                max(_LANE, (max_block_bytes // bytes_per_col) // _LANE * _LANE))
    c_tile, ncores_eff, steps = _choose_col_tiling(C, c_cap, ncores)
    n_blocks = ncores_eff * steps
    rem_c = C - (n_blocks - 1) * c_tile                  # valid cols in last block

    in_spec = pl.BlockSpec((R, c_tile), lambda c, i: (0, c * steps + i))
    out_spec = pl.BlockSpec((1, _LANE), lambda c, i: (c, 0))

    if ncores_eff > 1:
        lead_sem = getattr(pltpu, "CORE_PARALLEL", pltpu.PARALLEL)
    else:
        lead_sem = pltpu.ARBITRARY
    vmem_limit = int(min(vmem_phys, budget + 16 * 1024 * 1024))

    partials = pl.pallas_call(
        _make_l1_kernel(R, c_tile, rem_c),
        out_shape=jax.ShapeDtypeStruct((ncores_eff, _LANE), jnp.float32),
        grid=(ncores_eff, steps),
        in_specs=[in_spec, in_spec],
        out_specs=out_spec,
        scratch_shapes=[pltpu.VMEM((R, _LANE), jnp.float32)],
        compiler_params=pltpu.CompilerParams(
            dimension_semantics=(lead_sem, pltpu.ARBITRARY),
            vmem_limit_bytes=vmem_limit,
        ),
        cost_estimate=pl.CostEstimate(
            flops=3 * n,
            transcendentals=0,
            bytes_accessed=2 * n * itemsize + ncores_eff * _LANE * 4,
        ),
    )(a2, b2)

    # Cross-lane / cross-core finish + mean over the true element count.
    return jnp.sum(partials) / jnp.float32(n)


# --------------------------------------------------------------------------- #
# Decoder loss: BCE(detected, message) — tiny (B, M); plain jnp (XLA fuses it).
# --------------------------------------------------------------------------- #
def _bce_mean(p, y):
    p = p.astype(jnp.float32)
    y = y.astype(jnp.float32)
    # torch.nn.BCELoss clamps each log term at -100.
    log_p = jnp.maximum(jnp.log(p), jnp.float32(-100.0))
    log_1mp = jnp.maximum(jnp.log(1.0 - p), jnp.float32(-100.0))
    return jnp.mean(-(y * log_p + (1.0 - y) * log_1mp))


# --------------------------------------------------------------------------- #
# Loss-weight schedule (host-side Python, mirrors the stateful module used once
# per training step): one +0.2/-0.2 bump per completed 1400 steps, pinned to
# (2.5, 0.5) from step 14000 onward.
# --------------------------------------------------------------------------- #
def _loss_weights(step):
    # TODO(synk): the PyTorch module is stateful; this reconstructs the schedule
    # assuming one forward call per training step.
    step = int(step)
    if step >= 14000:
        return 2.5, 0.5
    k = step // 1400 if step > 0 else 0
    return 1.0 + 0.2 * k, 3.0 - 0.2 * k


def watermark_loss(embedded, detected, original_signal, original_message, step):
    """
    embedded, original_signal : (B, 1, T) or (B, T) float signals (f32 or bf16)
    detected                  : (B, M) probabilities in (0, 1)
    original_message          : (B, 1, M) or (B, M) 0/1 targets
    step                      : python int (static)
    """
    enc_w, dec_w = _loss_weights(step)

    embedded = jnp.asarray(embedded)
    original_signal = jnp.asarray(original_signal)
    encoder_loss = _l1_mean_pallas(embedded, original_signal)

    det2 = jnp.asarray(detected)
    det2 = det2.reshape(det2.shape[0], -1)
    msg2 = jnp.asarray(original_message).reshape(det2.shape)
    decoder_loss = _bce_mean(det2, msg2)

    total_loss = enc_w * encoder_loss + dec_w * decoder_loss
    return total_loss, encoder_loss, decoder_loss


if __name__ == "__main__":
    key = jax.random.PRNGKey(0)
    k1, k2, k3, k4 = jax.random.split(key, 4)

    B, T, M = 2, 3000, 32  # small: batch=2, signal length=3000, message bits=32
    # (T=3000 deliberately not a multiple of 128 to exercise the in-kernel tail mask)

    original_signal = jax.random.normal(k1, (B, 1, T), dtype=jnp.float32)
    embedded = original_signal + 0.05 * jax.random.normal(k2, (B, 1, T), dtype=jnp.float32)
    detected = jax.nn.sigmoid(jax.random.normal(k3, (B, M), dtype=jnp.float32))
    original_message = jax.random.bernoulli(k4, 0.5, (B, 1, M)).astype(jnp.float32)

    step = 1400
    loss_fn = jax.jit(watermark_loss, static_argnums=(4,))
    total, enc, dec = loss_fn(embedded, detected, original_signal, original_message, step)
    jax.block_until_ready((total, enc, dec))

    # sanity check against a pure-JAX reference
    ref_enc = jnp.mean(jnp.abs(embedded - original_signal))
    msg_sq = original_message.reshape(detected.shape)
    ref_dec = jnp.mean(
        -(msg_sq * jnp.maximum(jnp.log(detected), -100.0)
          + (1.0 - msg_sq) * jnp.maximum(jnp.log(1.0 - detected), -100.0)))
    ref_total = 1.2 * ref_enc + 2.8 * ref_dec
    assert jnp.allclose(enc, ref_enc, rtol=1e-5, atol=1e-5), (enc, ref_enc)
    assert jnp.allclose(dec, ref_dec, rtol=1e-5, atol=1e-5), (dec, ref_dec)
    assert jnp.allclose(total, ref_total, rtol=1e-5, atol=1e-5), (total, ref_total)

    print("KERNEL_OK")
</pallas_src>

<mosaic_0001>
module attributes {stable_mosaic.version = 11 : i64} {
  func.func @kernel(%arg0: i32, %arg1: i32, %arg2: memref<2x2944xf32, #tpu.memory_space<vmem>>, %arg3: memref<2x2944xf32, #tpu.memory_space<vmem>>, %arg4: memref<1x128xf32, #tpu.memory_space<vmem>>, %arg5: memref<2x128xf32, #tpu.memory_space<vmem>>) attributes {dimension_semantics = [#tpu.dimension_semantics<arbitrary>, #tpu.dimension_semantics<arbitrary>], iteration_bounds = array<i64: 1, 2>, scalar_prefetch = 0 : i64, scratch_operands = 1 : i64, tpu.core_type = #tpu.core_type<tc>, window_params = [{transform_indices = @transform_0, window_bounds = array<i64: 2, 2944>}, {transform_indices = @transform_1, window_bounds = array<i64: 2, 2944>}, {transform_indices = @transform_2, window_bounds = array<i64: 1, 128>}]} {
    %c0_i32 = arith.constant 0 : i32
    %0 = arith.cmpi eq, %arg1, %c0_i32 : i32
    %1 = arith.extui %0 : i1 to i32
    %c0_i32_0 = arith.constant 0 : i32
    %2 = arith.cmpi ne, %1, %c0_i32_0 : i32
    scf.if %2 {
      %cst = arith.constant 0.000000e+00 : f32
      %18 = vector.broadcast %cst : f32 to vector<2x128xf32>
      %c0_9 = arith.constant 0 : index
      %c0_10 = arith.constant 0 : index
      %19 = vector.load %arg5[%c0_9, %c0_10] : memref<2x128xf32, #tpu.memory_space<vmem>>, vector<2x128xf32>
      tpu.vector_store %arg5[%c0_9, %c0_10], %18 {strides = array<i32>} : memref<2x128xf32, #tpu.memory_space<vmem>>, vector<2x128xf32>,
    } else {
    }
    %c0 = arith.constant 0 : index
    %c0_1 = arith.constant 0 : index
    %3 = vector.load %arg2[%c0, %c0_1] : memref<2x2944xf32, #tpu.memory_space<vmem>>, vector<2x2944xf32>
    %c0_2 = arith.constant 0 : index
    %c0_3 = arith.constant 0 : index
    %4 = vector.load %arg3[%c0_2, %c0_3] : memref<2x2944xf32, #tpu.memory_space<vmem>>, vector<2x2944xf32>
    %5 = arith.subf %3, %4 : vector<2x2944xf32>
    %6 = math.absf %5 : vector<2x2944xf32>
    %c0_i32_4 = arith.constant 0 : i32
    %7 = arith.cmpi eq, %arg0, %c0_i32_4 : i32
    %c1_i32 = arith.constant 1 : i32
    %8 = arith.cmpi eq, %arg1, %c1_i32 : i32
    %9 = arith.andi %7, %8 : i1
    %10 = arith.extui %9 : i1 to i32
    %c0_i32_5 = arith.constant 0 : i32
    %11 = arith.cmpi ne, %10, %c0_i32_5 : i32
    scf.if %11 {
      %18 = tpu.iota {dimensions = array<i32: 1>} : vector<2x2944xi32>
      %c56_i32 = arith.constant 56 : i32
      %19 = vector.broadcast %c56_i32 : i32 to vector<2x2944xi32>
      %20 = arith.cmpi slt, %18, %19 : vector<2x2944xi32>
      %cst = arith.constant 0.000000e+00 : f32
      %21 = vector.broadcast %cst : f32 to vector<2x2944xf32>
      %22 = arith.select %20, %6, %21 : vector<2x2944xi1>, vector<2x2944xf32>
      %c0_9 = arith.constant 0 : index
      %c0_10 = arith.constant 0 : index
      %23 = vector.load %arg5[%c0_9, %c0_10] : memref<2x128xf32, #tpu.memory_space<vmem>>, vector<2x128xf32>
      %24 = vector.extract_strided_slice %22 {offsets = [0, 0], sizes = [2, 128], strides = [1, 1]} : vector<2x2944xf32> to vector<2x128xf32>
      %25 = vector.extract_strided_slice %22 {offsets = [0, 128], sizes = [2, 128], strides = [1, 1]} : vector<2x2944xf32> to vector<2x128xf32>
      %26 = vector.extract_strided_slice %22 {offsets = [0, 256], sizes = [2, 128], strides = [1, 1]} : vector<2x2944xf32> to vector<2x128xf32>
      %27 = vector.extract_strided_slice %22 {offsets = [0, 384], sizes = [2, 128], strides = [1, 1]} : vector<2x2944xf32> to vector<2x128xf32>
      %28 = vector.extract_strided_slice %22 {offsets = [0, 512], sizes = [2, 128], strides = [1, 1]} : vector<2x2944xf32> to vector<2x128xf32>
      %29 = vector.extract_strided_slice %22 {offsets = [0, 640], sizes = [2, 128], strides = [1, 1]} : vector<2x2944xf32> to vector<2x128xf32>
      %30 = vector.extract_strided_slice %22 {offsets = [0, 768], sizes = [2, 128], strides = [1, 1]} : vector<2x2944xf32> to vector<2x128xf32>
      %31 = vector.extract_strided_slice %22 {offsets = [0, 896], sizes = [2, 128], strides = [1, 1]} : vector<2x2944xf32> to vector<2x128xf32>
      %32 = vector.extract_strided_slice %22 {offsets = [0, 1024], sizes = [2, 128], strides = [1, 1]} : vector<2x2944xf32> to vector<2x128xf32>
      %33 = vector.extract_strided_slice %22 {offsets = [0, 1152], sizes = [2, 128], strides = [1, 1]} : vector<2x2944xf32> to vector<2x128xf32>
      %34 = vector.extract_strided_slice %22 {offsets = [0, 1280], sizes = [2, 128], strides = [1, 1]} : vector<2x2944xf32> to vector<2x128xf32>
      %35 = vector.extract_strided_slice %22 {offsets = [0, 1408], sizes = [2, 128], strides = [1, 1]} : vector<2x2944xf32> to vector<2x128xf32>
      %36 = vector.extract_strided_slice %22 {offsets = [0, 1536], sizes = [2, 128], strides = [1, 1]} : vector<2x2944xf32> to vector<2x128xf32>
      %37 = vector.extract_strided_slice %22 {offsets = [0, 1664], sizes = [2, 128], strides = [1, 1]} : vector<2x2944xf32> to vector<2x128xf32>
      %38 = vector.extract_strided_slice %22 {offsets = [0, 1792], sizes = [2, 128], strides = [1, 1]} : vector<2x2944xf32> to vector<2x128xf32>
      %39 = vector.extract_strided_slice %22 {offsets = [0, 1920], sizes = [2, 128], strides = [1, 1]} : vector<2x2944xf32> to vector<2x128xf32>
      %40 = vector.extract_strided_slice %22 {offsets = [0, 2048], sizes = [2, 128], strides = [1, 1]} : vector<2x2944xf32> to vector<2x128xf32>
      %41 = vector.extract_strided_slice %22 {offsets = [0, 2176], sizes = [2, 128], strides = [1, 1]} : vector<2x2944xf32> to vector<2x128xf32>
      %42 = vector.extract_strided_slice %22 {offsets = [0, 2304], sizes = [2, 128], strides = [1, 1]} : vector<2x2944xf32> to vector<2x128xf32>
      %43 = vector.extract_strided_slice %22 {offsets = [0, 2432], sizes = [2, 128], strides = [1, 1]} : vector<2x2944xf32> to vector<2x128xf32>
      %44 = vector.extract_strided_slice %22 {offsets = [0, 2560], sizes = [2, 128], strides = [1, 1]} : vector<2x2944xf32> to vector<2x128xf32>
      %45 = vector.extract_strided_slice %22 {offsets = [0, 2688], sizes = [2, 128], strides = [1, 1]} : vector<2x2944xf32> to vector<2x128xf32>
      %46 = vector.extract_strided_slice %22 {offsets = [0, 2816], sizes = [2, 128], strides = [1, 1]} : vector<2x2944xf32> to vector<2x128xf32>
      %47 = arith.addf %24, %25 : vector<2x128xf32>
      %48 = arith.addf %26, %27 : vector<2x128xf32>
      %49 = arith.addf %28, %29 : vector<2x128xf32>
      %50 = arith.addf %30, %31 : vector<2x128xf32>
      %51 = arith.addf %32, %33 : vector<2x128xf32>
      %52 = arith.addf %34, %35 : vector<2x128xf32>
      %53 = arith.addf %36, %37 : vector<2x128xf32>
      %54 = arith.addf %38, %39 : vector<2x128xf32>
      %55 = arith.addf %40, %41 : vector<2x128xf32>
      %56 = arith.addf %42, %43 : vector<2x128xf32>
      %57 = arith.addf %44, %45 : vector<2x128xf32>
      %58 = arith.addf %47, %48 : vector<2x128xf32>
      %59 = arith.addf %49, %50 : vector<2x128xf32>
      %60 = arith.addf %51, %52 : vector<2x128xf32>
      %61 = arith.addf %53, %54 : vector<2x128xf32>
      %62 = arith.addf %55, %56 : vector<2x128xf32>
      %63 = arith.addf %57, %46 : vector<2x128xf32>
      %64 = arith.addf %58, %59 : vector<2x128xf32>
      %65 = arith.addf %60, %61 : vector<2x128xf32>
      %66 = arith.addf %62, %63 : vector<2x128xf32>
      %67 = arith.addf %64, %65 : vector<2x128xf32>
      %68 = arith.addf %67, %66 : vector<2x128xf32>
      %69 = arith.addf %23, %68 : vector<2x128xf32>
      %c0_11 = arith.constant 0 : index
      %c0_12 = arith.constant 0 : index
      %70 = vector.load %arg5[%c0_11, %c0_12] : memref<2x128xf32, #tpu.memory_space<vmem>>, vector<2x128xf32>
      tpu.vector_store %arg5[%c0_11, %c0_12], %69 {strides = array<i32>} : memref<2x128xf32, #tpu.memory_space<vmem>>, vector<2x128xf32>,
    } else {
    }
    %true = arith.constant true
    %12 = arith.xori %9, %true : i1
    %13 = arith.extui %12 : i1 to i32
    %c0_i32_6 = arith.constant 0 : i32
    %14 = arith.cmpi ne, %13, %c0_i32_6 : i32
    scf.if %14 {
      %c0_9 = arith.constant 0 : index
      %c0_10 = arith.constant 0 : index
      %18 = vector.load %arg5[%c0_9, %c0_10] : memref<2x128xf32, #tpu.memory_space<vmem>>, vector<2x128xf32>
      %19 = vector.extract_strided_slice %6 {offsets = [0, 0], sizes = [2, 128], strides = [1, 1]} : vector<2x2944xf32> to vector<2x128xf32>
      %20 = vector.extract_strided_slice %6 {offsets = [0, 128], sizes = [2, 128], strides = [1, 1]} : vector<2x2944xf32> to vector<2x128xf32>
      %21 = vector.extract_strided_slice %6 {offsets = [0, 256], sizes = [2, 128], strides = [1, 1]} : vector<2x2944xf32> to vector<2x128xf32>
      %22 = vector.extract_strided_slice %6 {offsets = [0, 384], sizes = [2, 128], strides = [1, 1]} : vector<2x2944xf32> to vector<2x128xf32>
      %23 = vector.extract_strided_slice %6 {offsets = [0, 512], sizes = [2, 128], strides = [1, 1]} : vector<2x2944xf32> to vector<2x128xf32>
      %24 = vector.extract_strided_slice %6 {offsets = [0, 640], sizes = [2, 128], strides = [1, 1]} : vector<2x2944xf32> to vector<2x128xf32>
      %25 = vector.extract_strided_slice %6 {offsets = [0, 768], sizes = [2, 128], strides = [1, 1]} : vector<2x2944xf32> to vector<2x128xf32>
      %26 = vector.extract_strided_slice %6 {offsets = [0, 896], sizes = [2, 128], strides = [1, 1]} : vector<2x2944xf32> to vector<2x128xf32>
      %27 = vector.extract_strided_slice %6 {offsets = [0, 1024], sizes = [2, 128], strides = [1, 1]} : vector<2x2944xf32> to vector<2x128xf32>
      %28 = vector.extract_strided_slice %6 {offsets = [0, 1152], sizes = [2, 128], strides = [1, 1]} : vector<2x2944xf32> to vector<2x128xf32>
      %29 = vector.extract_strided_slice %6 {offsets = [0, 1280], sizes = [2, 128], strides = [1, 1]} : vector<2x2944xf32> to vector<2x128xf32>
      %30 = vector.extract_strided_slice %6 {offsets = [0, 1408], sizes = [2, 128], strides = [1, 1]} : vector<2x2944xf32> to vector<2x128xf32>
      %31 = vector.extract_strided_slice %6 {offsets = [0, 1536], sizes = [2, 128], strides = [1, 1]} : vector<2x2944xf32> to vector<2x128xf32>
      %32 = vector.extract_strided_slice %6 {offsets = [0, 1664], sizes = [2, 128], strides = [1, 1]} : vector<2x2944xf32> to vector<2x128xf32>
      %33 = vector.extract_strided_slice %6 {offsets = [0, 1792], sizes = [2, 128], strides = [1, 1]} : vector<2x2944xf32> to vector<2x128xf32>
      %34 = vector.extract_strided_slice %6 {offsets = [0, 1920], sizes = [2, 128], strides = [1, 1]} : vector<2x2944xf32> to vector<2x128xf32>
      %35 = vector.extract_strided_slice %6 {offsets = [0, 2048], sizes = [2, 128], strides = [1, 1]} : vector<2x2944xf32> to vector<2x128xf32>
      %36 = vector.extract_strided_slice %6 {offsets = [0, 2176], sizes = [2, 128], strides = [1, 1]} : vector<2x2944xf32> to vector<2x128xf32>
      %37 = vector.extract_strided_slice %6 {offsets = [0, 2304], sizes = [2, 128], strides = [1, 1]} : vector<2x2944xf32> to vector<2x128xf32>
      %38 = vector.extract_strided_slice %6 {offsets = [0, 2432], sizes = [2, 128], strides = [1, 1]} : vector<2x2944xf32> to vector<2x128xf32>
      %39 = vector.extract_strided_slice %6 {offsets = [0, 2560], sizes = [2, 128], strides = [1, 1]} : vector<2x2944xf32> to vector<2x128xf32>
      %40 = vector.extract_strided_slice %6 {offsets = [0, 2688], sizes = [2, 128], strides = [1, 1]} : vector<2x2944xf32> to vector<2x128xf32>
      %41 = vector.extract_strided_slice %6 {offsets = [0, 2816], sizes = [2, 128], strides = [1, 1]} : vector<2x2944xf32> to vector<2x128xf32>
      %42 = arith.addf %19, %20 : vector<2x128xf32>
      %43 = arith.addf %21, %22 : vector<2x128xf32>
      %44 = arith.addf %23, %24 : vector<2x128xf32>
      %45 = arith.addf %25, %26 : vector<2x128xf32>
      %46 = arith.addf %27, %28 : vector<2x128xf32>
      %47 = arith.addf %29, %30 : vector<2x128xf32>
      %48 = arith.addf %31, %32 : vector<2x128xf32>
      %49 = arith.addf %33, %34 : vector<2x128xf32>
      %50 = arith.addf %35, %36 : vector<2x128xf32>
      %51 = arith.addf %37, %38 : vector<2x128xf32>
      %52 = arith.addf %39, %40 : vector<2x128xf32>
      %53 = arith.addf %42, %43 : vector<2x128xf32>
      %54 = arith.addf %44, %45 : vector<2x128xf32>
      %55 = arith.addf %46, %47 : vector<2x128xf32>
      %56 = arith.addf %48, %49 : vector<2x128xf32>
      %57 = arith.addf %50, %51 : vector<2x128xf32>
      %58 = arith.addf %52, %41 : vector<2x128xf32>
      %59 = arith.addf %53, %54 : vector<2x128xf32>
      %60 = arith.addf %55, %56 : vector<2x128xf32>
      %61 = arith.addf %57, %58 : vector<2x128xf32>
      %62 = arith.addf %59, %60 : vector<2x128xf32>
      %63 = arith.addf %62, %61 : vector<2x128xf32>
      %64 = arith.addf %18, %63 : vector<2x128xf32>
      %c0_11 = arith.constant 0 : index
      %c0_12 = arith.constant 0 : index
      %65 = vector.load %arg5[%c0_11, %c0_12] : memref<2x128xf32, #tpu.memory_space<vmem>>, vector<2x128xf32>
      tpu.vector_store %arg5[%c0_11, %c0_12], %64 {strides = array<i32>} : memref<2x128xf32, #tpu.memory_space<vmem>>, vector<2x128xf32>,
    } else {
    }
    %c1_i32_7 = arith.constant 1 : i32
    %15 = arith.cmpi eq, %arg1, %c1_i32_7 : i32
    %16 = arith.extui %15 : i1 to i32
    %c0_i32_8 = arith.constant 0 : i32
    %17 = arith.cmpi ne, %16, %c0_i32_8 : i32
    scf.if %17 {
      %c0_9 = arith.constant 0 : index
      %c0_10 = arith.constant 0 : index
      %18 = vector.load %arg5[%c0_9, %c0_10] : memref<2x128xf32, #tpu.memory_space<vmem>>, vector<2x128xf32>
      %cst = arith.constant dense<0.000000e+00> : vector<128xf32>
      %19 = vector.multi_reduction <add>, %18, %cst [0] : vector<2x128xf32> to vector<128xf32>
      %20 = vector.shape_cast %19 : vector<128xf32> to vector<1x128xf32>
      %c0_11 = arith.constant 0 : index
      %c0_12 = arith.constant 0 : index
      %21 = vector.load %arg4[%c0_11, %c0_12] : memref<1x128xf32, #tpu.memory_space<vmem>>, vector<1x128xf32>
      tpu.vector_store %arg4[%c0_11, %c0_12], %20 {strides = array<i32>} : memref<1x128xf32, #tpu.memory_space<vmem>>, vector<1x128xf32>,
    } else {
    }
    return
  }
  func.func @transform_0(%arg0: i32, %arg1: i32) -> (i32, i32) {
    %c2_i32 = arith.constant 2 : i32
    %0 = arith.muli %arg0, %c2_i32 : i32
    %1 = arith.addi %0, %arg1 : i32
    %c0_i32 = arith.constant 0 : i32
    %c0_i32_0 = arith.constant 0 : i32
    return %c0_i32, %1 : i32, i32
  }
  func.func @transform_1(%arg0: i32, %arg1: i32) -> (i32, i32) {
    %c2_i32 = arith.constant 2 : i32
    %0 = arith.muli %arg0, %c2_i32 : i32
    %1 = arith.addi %0, %arg1 : i32
    %c0_i32 = arith.constant 0 : i32
    %c0_i32_0 = arith.constant 0 : i32
    return %c0_i32, %1 : i32, i32
  }
  func.func @transform_2(%arg0: i32, %arg1: i32) -> (i32, i32) {
    %c0_i32 = arith.constant 0 : i32
    %c0_i32_0 = arith.constant 0 : i32
    return %arg0, %c0_i32 : i32, i32
  }
}

</mosaic_0001>

<llo_original>
// kernel: watermark_loss.1
$region0: #{watermark_loss.1}
  #allocation0 [shape = 'u32[]', space=smem, size = 0x4, offset = 0x4, fixed_abs, tag = 'smem constant byte address 0x4 - core index']
  #allocation1 [shape = 'u32[144,128]{1,0:T(1,128)}', space=vmem, size = 0x12000, scoped, tag = 'internal scratch']
  #allocation2 [shape = 'f32[2,128]{1,0:T(2,128)}', space=vmem, size = 0x400, scoped, tag = 'scratch operand']
  %s0 = inlined_call_operand.hbm [shape: f32[2,3000], index: 0, kind: input, shape index: {}]
  %s1 = inlined_call_operand.hbm [shape: f32[2,3000], index: 1, kind: input, shape index: {}]
  %s2 = inlined_call_operand.hbm [shape: f32[1,128], index: 2, kind: output, shape index: {}]
  %s3 = sld [smem:[#allocation0]]
  $region65: #{watermark_loss.1} parent=0
    _
  %s5 = ssub.s32 1, %s3
  %s6 = scalar_select 0, %s5, %s3
  $region1: #{watermark_loss.1} parent=0
    #allocation3 [shape = 'u8[47104]{0}', space=vmem, size = 0xb800, scoped, tag = 'input window, operand 0']
    #allocation4 [shape = 's32[2]{0}', space=sflag, size = 0x8, scoped, tag = 'scoped memory for watermark_loss.1']
    #allocation5 [shape = 's32[2]{0}', space=sflag, size = 0x8, scoped, tag = 'scoped memory for watermark_loss.1']
    #allocation6 [shape = 'u8[47104]{0}', space=vmem, size = 0xb800, scoped, tag = 'input window, operand 1']
    #allocation7 [shape = 's32[2]{0}', space=sflag, size = 0x8, scoped, tag = 'scoped memory for watermark_loss.1']
    #allocation8 [shape = 'u8[512]{0}', space=vmem, size = 0x400, scoped, tag = 'output window, operand 0, single buffered']
    %7 = vsyncpa [#allocation4], 0
    %s8 = scalar_lea.sflag [#allocation4], 1
    %9 = vsyncpa %s8, 0
    %10 = vsyncpa [#allocation7], 0
    %s11 = scalar_lea.sflag [#allocation7], 1
    %12 = vsyncpa %s11, 0
    %13 = vsyncpa [#allocation5], 0
    loop: start=0, step=1, limit=4
    $region2: #{watermark_loss.1} parent=1 // loop_pre_header
      _
    $region3: #{watermark_loss.1} parent=1 // loop_header
      %s15 = sphi 0, %s19
      %p16 = scmp.ge.s32.totalorder %s15, 4
      %s22 = sphi 0, %s34
      %s23 = sphi 0, %s30
      %s24 = sphi 0, %s22
      %s25 = sphi 0, %s23
      %s26 = sphi 0, %s24
      %s27 = sphi 0, %s25
      %s41 = sphi 0, %s43
      %s44 = sphi 0, %s41
      %s45 = sphi 0, %s44
      %s61 = sphi 0, %s45
      %s71 = sphi 0, %s73
      %s74 = sphi 0, %s71
      %s75 = sphi 0, %s74
      %s91 = sphi 0, %s75
      %s97 = sphi 0, %s99
      %s100 = sphi 0, %s97
      %s101 = sphi 0, %s100
      %s117 = sphi 0, %s101
    $region4: #{watermark_loss.1} parent=1 // loop_header_branch
      %18 = sbr.rel (%p16) target = $region8
    $region5: #{watermark_loss.1} parent=1 // loop_body
      %s20 = ssub.s32 %s15, 1
      %s21 = ssub.s32 %s15, 2
      %s28 = sadd.s32 1, %s23
      %p29 = scmp.ge.s32.totalorder %s28, 2
      %s30 = scalar_select %p29, 0, %s28
      %s31 = sadd.s32 1, %s22
      %s32 = scalar_select %p29, %s31, %s22
      %p33 = scmp.ge.s32.totalorder %s32, 1
      %s34 = scalar_select %p33, 0, %s32
      %s35 = smul.u32 %s22, 2
      %s36 = sadd.s32 %s35, %s23
      %s37 = smul.u32 %s34, 2
      %s38 = sadd.s32 %s37, %s30
      %s39 = ssub.s32 %s36, %s38
      %p40 = scmp.eq.s32.totalorder %s39, 0
      %s42 = sadd.s32 %s41, 1
      %s43 = scalar_select %p40, %s41, %s42
      %p46 = pneg %p40
      %p47 = scmp.eq.s32.totalorder %s15, 1
      %p48 = por %p46, %p47
      %p49 = scmp.ne.s32.totalorder %s41, %s44
      %p50 = scmp.eq.s32.totalorder %s15, 0
      %p51 = por %p49, %p50
      %p52 = scmp.ne.s32.totalorder %s41, %s44
      %p53 = scmp.eq.s32.totalorder %s20, 1
      %p54 = por %p52, %p53
      %p55 = scmp.ne.s32.totalorder %s44, %s45
      %p56 = scmp.eq.s32.totalorder %s20, 0
      %p57 = por %p55, %p56
      %p58 = scmp.ne.s32.totalorder %s44, %s45
      %p59 = scmp.eq.s32.totalorder %s21, 1
      %p60 = por %p58, %p59
      %p62 = scmp.ne.s32.totalorder %s45, %s61
      %p63 = scmp.eq.s32.totalorder %s21, 0
      %p64 = por %p62, %p63
      %s65 = smul.u32 %s22, 2
      %s66 = sadd.s32 %s65, %s23
      %s67 = smul.u32 %s34, 2
      %s68 = sadd.s32 %s67, %s30
      %s69 = ssub.s32 %s66, %s68
      %p70 = scmp.eq.s32.totalorder %s69, 0
      %s72 = sadd.s32 %s71, 1
      %s73 = scalar_select %p70, %s71, %s72
      %p76 = pneg %p70
      %p77 = scmp.eq.s32.totalorder %s15, 1
      %p78 = por %p76, %p77
      %p79 = scmp.ne.s32.totalorder %s71, %s74
      %p80 = scmp.eq.s32.totalorder %s15, 0
      %p81 = por %p79, %p80
      %p82 = scmp.ne.s32.totalorder %s71, %s74
      %p83 = scmp.eq.s32.totalorder %s20, 1
      %p84 = por %p82, %p83
      %p85 = scmp.ne.s32.totalorder %s74, %s75
      %p86 = scmp.eq.s32.totalorder %s20, 0
      %p87 = por %p85, %p86
      %p88 = scmp.ne.s32.totalorder %s74, %s75
      %p89 = scmp.eq.s32.totalorder %s21, 1
      %p90 = por %p88, %p89
      %p92 = scmp.ne.s32.totalorder %s75, %s91
      %p93 = scmp.eq.s32.totalorder %s21, 0
      %p94 = por %p92, %p93
      %s95 = ssub.s32 %s22, %s34
      %p96 = scmp.eq.s32.totalorder %s95, 0
      %s98 = sadd.s32 %s97, 1
      %s99 = scalar_select %p96, %s97, %s98
      %p102 = pneg %p96
      %p103 = scmp.eq.s32.totalorder %s15, 1
      %p104 = por %p102, %p103
      %p105 = scmp.ne.s32.totalorder %s97, %s100
      %p106 = scmp.eq.s32.totalorder %s15, 0
      %p107 = por %p105, %p106
      %p108 = scmp.ne.s32.totalorder %s97, %s100
      %p109 = scmp.eq.s32.totalorder %s20, 1
      %p110 = por %p108, %p109
      %p111 = scmp.ne.s32.totalorder %s100, %s101
      %p112 = scmp.eq.s32.totalorder %s20, 0
      %p113 = por %p111, %p112
      %p114 = scmp.ne.s32.totalorder %s100, %s101
      %p115 = scmp.eq.s32.totalorder %s21, 1
      %p116 = por %p114, %p115
      %p118 = scmp.ne.s32.totalorder %s101, %s117
      %p119 = scmp.eq.s32.totalorder %s21, 0
      %p120 = por %p118, %p119
      %p121 = scmp.le.s32.totalorder 1, %s15
      %p122 = scmp.lt.s32.totalorder %s15, 3
      %p123 = pnand %p121, %p122
      %p124 = pneg %p123
      // Predicated region
      $region9: #{watermark_loss.1} parent=5 // pred_check
        _
      $region10: #{watermark_loss.1} parent=5 // pred_check_branch
        %126 = sbr.rel (%p123) target = $region12
      $region11: #{watermark_loss.1} parent=5 // pred_region
        %s127 = ssub.s32 %s15, 1
      $region12: #{watermark_loss.1} parent=5 // pred_fallthru
        _
      %p128 = scmp.lt.s32.totalorder %s15, 2
      // Predicated region
      $region13: #{watermark_loss.1} parent=5 // pred_check
        %p129 = pneg %p128
      $region14: #{watermark_loss.1} parent=5 // pred_check_branch
        %131 = sbr.rel (%p129) target = $region16
      $region15: #{watermark_loss.1} parent=5 // pred_region
        // Predicated region
        $region17: #{watermark_loss.1} parent=15 // pred_check
          %p132 = pneg %p51
        $region18: #{watermark_loss.1} parent=15 // pred_check_branch
          %134 = sbr.rel (%p132) target = $region20
        $region19: #{watermark_loss.1} parent=15 // pred_region
          %s135 = sand.u32 %s41, 1
          %s136 = scalar_lea.sflag [#allocation4], %s135
          %s137 = sand.u32 %s41, 1
          %s138 = smul.addr %s137, 46
          %s139 = scalar_lea.vmem [#allocation3], %s138
          %s140 = smul.u32 %s22, 2
          %s141 = sadd.s32 %s140, %s23
          %s142 = smul.u32 23, %s141
          %s143 = ssub.s32 24, %s142
          %p144 = scmp.lt.s32.totalorder %s143, 23
          %s145 = scalar_select %p144, %s143, 23
          %s146 = smul.u32 32, %s145
          %s148 = ssub.s32 736, %s146
          %149 = vsyncadd %s136, %s148
          %p150 = scmp.ne.s32.totalorder 0, %s146
          %s151 = smul.addr %s142, 32
          %s152 = scalar_lea.hbm %s0, %s151
          %s153 = smul.u32 %s145, 2
          %s154 = sshll.u32 %s153, 4
          %s155 = sshll.u32 %s139, 4
          %s156 = int_to_ptr.vmem [resolvable:$true] %s155
          %158 = dma.hbm_to_vmem [thread:$0]  (%p150), %s152, %s154, %s156, %s136
        $region20: #{watermark_loss.1} parent=15 // pred_fallthru
          _
        // Predicated region
        $region21: #{watermark_loss.1} parent=15 // pred_check
          %p159 = pneg %p81
        $region22: #{watermark_loss.1} parent=15 // pred_check_branch
          %161 = sbr.rel (%p159) target = $region24
        $region23: #{watermark_loss.1} parent=15 // pred_region
          %s162 = sand.u32 %s71, 1
          %s163 = scalar_lea.sflag [#allocation7], %s162
          %s164 = sand.u32 %s71, 1
          %s165 = smul.addr %s164, 46
          %s166 = scalar_lea.vmem [#allocation6], %s165
          %s167 = smul.u32 %s22, 2
          %s168 = sadd.s32 %s167, %s23
          %s169 = smul.u32 23, %s168
          %s170 = ssub.s32 24, %s169
          %p171 = scmp.lt.s32.totalorder %s170, 23
          %s172 = scalar_select %p171, %s170, 23
          %s173 = smul.u32 32, %s172
          %s175 = ssub.s32 736, %s173
          %176 = vsyncadd %s163, %s175
          %p177 = scmp.ne.s32.totalorder 0, %s173
          %s178 = smul.addr %s169, 32
          %s179 = scalar_lea.hbm %s1, %s178
          %s180 = smul.u32 %s172, 2
          %s181 = sshll.u32 %s180, 4
          %s182 = sshll.u32 %s166, 4
          %s183 = int_to_ptr.vmem [resolvable:$true] %s182
          %185 = dma.hbm_to_vmem [thread:$0]  (%p177), %s179, %s181, %s183, %s163
        $region24: #{watermark_loss.1} parent=15 // pred_fallthru
          _
      $region16: #{watermark_loss.1} parent=5 // pred_fallthru
        _
      %p186 = scmp.le.s32.totalorder 1, %s15
      %p187 = scmp.lt.s32.totalorder %s15, 3
      %p188 = pnand %p186, %p187
      %p189 = pneg %p188
      // Predicated region
      $region25: #{watermark_loss.1} parent=5 // pred_check
        _
      $region26: #{watermark_loss.1} parent=5 // pred_check_branch
        %191 = sbr.rel (%p188) target = $region28
      $region27: #{watermark_loss.1} parent=5 // pred_region
        %s192 = ssub.s32 %s15, 1
        %s193 = sand.u32 %s44, 1
        %s194 = scalar_lea.sflag [#allocation4], %s193
        %s195 = sand.u32 %s44, 1
        %s196 = smul.addr %s195, 46
        %s197 = scalar_lea.vmem [#allocation3], %s196
        // Predicated region
        $region29: #{watermark_loss.1} parent=27 // pred_check
          %p198 = pneg %p57
        $region30: #{watermark_loss.1} parent=27 // pred_check_branch
          %200 = sbr.rel (%p198) target = $region32
        $region31: #{watermark_loss.1} parent=27 // pred_region
          %201 = dma.done %s194, 736
        $region32: #{watermark_loss.1} parent=27 // pred_fallthru
          _
        %s202 = sand.u32 %s74, 1
        %s203 = scalar_lea.sflag [#allocation7], %s202
        %s204 = sand.u32 %s74, 1
        %s205 = smul.addr %s204, 46
        %s206 = scalar_lea.vmem [#allocation6], %s205
        // Predicated region
        $region33: #{watermark_loss.1} parent=27 // pred_check
          %p207 = pneg %p87
        $region34: #{watermark_loss.1} parent=27 // pred_check_branch
          %209 = sbr.rel (%p207) target = $region36
        $region35: #{watermark_loss.1} parent=27 // pred_region
          %210 = dma.done %s203, 736
        $region36: #{watermark_loss.1} parent=27 // pred_fallthru
          _
        %s211 = sand.u32 %s44, 1
        %s212 = scalar_lea.sflag [#allocation4], %s211
        %s213 = sand.u32 %s44, 1
        %s214 = smul.addr %s213, 46
        %s215 = scalar_lea.vmem [#allocation3], %s214
        %p216 = pneg %p57
        %p217 = pneg %p54
        %s218 = sand.u32 %s74, 1
        %s219 = scalar_lea.sflag [#allocation7], %s218
        %s220 = sand.u32 %s74, 1
        %s221 = smul.addr %s220, 46
        %s222 = scalar_lea.vmem [#allocation6], %s221
        %p223 = pneg %p87
        %p224 = pneg %p84
        %p225 = pneg %p113
        %p226 = pneg %p110
        %s227 = smul.u32 %s24, 2
        %s228 = sadd.s32 %s227, %s25
        %s229 = smul.u32 23, %s228
        %s230 = ssub.s32 24, %s229
        %p231 = scmp.lt.s32.totalorder %s230, 23
        %s232 = scalar_select %p231, %s230, 23
        %s233 = smul.u32 32, %s232
        %s234 = smul.u32 %s24, 2
        %s235 = sadd.s32 %s234, %s25
        %s236 = smul.u32 23, %s235
        %s237 = ssub.s32 24, %s236
        %p238 = scmp.lt.s32.totalorder %s237, 23
        %s239 = scalar_select %p238, %s237, 23
        %s240 = smul.u32 32, %s239
        %p241 = scmp.eq.s32.totalorder %s25, 0
        // Predicated region
        $region37: #{watermark_loss.1} parent=27 // pred_check
          %p242 = pneg %p241
        $region38: #{watermark_loss.1} parent=27 // pred_check_branch
          %244 = sbr.rel (%p242) target = $region40
        $region39: #{watermark_loss.1} parent=27 // pred_region
          %245 = vst [vmem:[#allocation2] sm:$0x3] 0.0
        $region40: #{watermark_loss.1} parent=27 // pred_fallthru
          _
        %v246 = vld [vmem:[%s197] sm:$0xff]
        %v247 = vld [vmem:[%s197 + $0x8] sm:$0xff]
        %v248 = vld [vmem:[%s197 + $0x10] sm:$0xff]
        %v249 = vld [vmem:[%s197 + $0x18] sm:$0xff]
        %v250 = vld [vmem:[%s197 + $0x20] sm:$0xff]
        %v251 = vld [vmem:[%s197 + $0x28] sm:$0x3f]
        %v252 = vld [vmem:[%s206] sm:$0xff]
        %v253 = vld [vmem:[%s206 + $0x8] sm:$0xff]
        %v254 = vld [vmem:[%s206 + $0x10] sm:$0xff]
        %v255 = vld [vmem:[%s206 + $0x18] sm:$0xff]
        %v256 = vld [vmem:[%s206 + $0x20] sm:$0xff]
        %v257 = vld [vmem:[%s206 + $0x28] sm:$0x3f]
        %v258 = vsub.f32 %v246, %v252
        %v259 = vsub.f32 %v247, %v253
        %v260 = vsub.f32 %v248, %v254
        %v261 = vsub.f32 %v249, %v255
        %v262 = vsub.f32 %v250, %v256
        %v263 = vsub.f32 %v251, %v257
        %v264 = vand.u32 2147483647, %v258
        %v265 = vand.u32 2147483647, %v259
        %v266 = vand.u32 2147483647, %v260
        %v267 = vand.u32 2147483647, %v261
        %v268 = vand.u32 2147483647, %v262
        %v269 = vand.u32 2147483647, %v263
        %p270 = scmp.eq.s32.totalorder %s24, 0
        %p271 = scmp.eq.s32.totalorder %s25, 1
        %p272 = pnand %p270, %p271
        %p273 = pneg %p272
        // Predicated region
        $region41: #{watermark_loss.1} parent=27 // pred_check
          _
        $region42: #{watermark_loss.1} parent=27 // pred_check_branch
          %275 = sbr.rel (%p272) target = $region44
        $region43: #{watermark_loss.1} parent=27 // pred_region
          %v276 = vlaneseq
          %v277 = vand.u32 %v276, 127
          %v278 = vadd.s32 %v277, 128
          %v279 = vadd.s32 %v277, 256
          %v280 = vadd.s32 %v277, 384
          %v281 = vadd.s32 %v277, 512
          %v282 = vadd.s32 %v277, 640
          %v283 = vadd.s32 %v277, 768
          %v284 = vadd.s32 %v277, 896
          %v285 = vadd.s32 %v277, 1024
          %v286 = vadd.s32 %v277, 1152
          %v287 = vadd.s32 %v277, 1280
          %v288 = vadd.s32 %v277, 1408
          %v289 = vadd.s32 %v277, 1536
          %v290 = vadd.s32 %v277, 1664
          %v291 = vadd.s32 %v277, 1792
          %v292 = vadd.s32 %v277, 1920
          %v293 = vadd.s32 %v277, 2048
          %v294 = vadd.s32 %v277, 2176
          %v295 = vadd.s32 %v277, 2304
          %v296 = vadd.s32 %v277, 2432
          %v297 = vadd.s32 %v277, 2560
          %v298 = vadd.s32 %v277, 2688
          %v299 = vadd.s32 %v277, 2816
          %vm300 = vcmp.lt.s32.totalorder %v277, 56
          %vm301 = vcmp.lt.s32.totalorder %v278, 56
          %vm302 = vcmp.lt.s32.totalorder %v279, 56
          %vm303 = vcmp.lt.s32.totalorder %v280, 56
          %vm304 = vcmp.lt.s32.totalorder %v281, 56
          %vm305 = vcmp.lt.s32.totalorder %v282, 56
          %vm306 = vcmp.lt.s32.totalorder %v283, 56
          %vm307 = vcmp.lt.s32.totalorder %v284, 56
          %vm308 = vcmp.lt.s32.totalorder %v285, 56
          %vm309 = vcmp.lt.s32.totalorder %v286, 56
          %vm310 = vcmp.lt.s32.totalorder %v287, 56
          %vm311 = vcmp.lt.s32.totalorder %v288, 56
          %vm312 = vcmp.lt.s32.totalorder %v289, 56
          %vm313 = vcmp.lt.s32.totalorder %v290, 56
          %vm314 = vcmp.lt.s32.totalorder %v291, 56
          %vm315 = vcmp.lt.s32.totalorder %v292, 56
          %vm316 = vcmp.lt.s32.totalorder %v293, 56
          %vm317 = vcmp.lt.s32.totalorder %v294, 56
          %vm318 = vcmp.lt.s32.totalorder %v295, 56
          %vm319 = vcmp.lt.s32.totalorder %v296, 56
          %vm320 = vcmp.lt.s32.totalorder %v297, 56
          %vm321 = vcmp.lt.s32.totalorder %v298, 56
          %vm322 = vcmp.lt.s32.totalorder %v299, 56
          %v329 = vcombine.high %v264, %v264
          %v331 = vunpack.c.l.s4 1983009808
          %v332 = vunpack.c.0.s8 %v331
          %v333 = vlaneseq
          %v334 = vshrl.u32 %v333, 7
          %v335 = vsub.s32 %v332, %v334
          %v336 = vrot.slane %v264, %v335
          %v338 = vunpack.c.l.s4 1983009808
          %v339 = vunpack.c.0.s8 %v338
          %v340 = vlaneseq
          %v341 = vshrl.u32 %v340, 7
          %v342 = vsub.s32 %v339, %v341
          %v343 = vrot.slane %v329, %v342
          %v344 = vcombine.high %v336, %v336
          %v345 = vcombine.high %v343, %v343
          %v346 = vcombine.high %v265, %v265
          %v348 = vunpack.c.l.s4 1983009808
          %v349 = vunpack.c.0.s8 %v348
          %v350 = vlaneseq
          %v351 = vshrl.u32 %v350, 7
          %v352 = vsub.s32 %v349, %v351
          %v353 = vrot.slane %v265, %v352
          %v355 = vunpack.c.l.s4 1983009808
          %v356 = vunpack.c.0.s8 %v355
          %v357 = vlaneseq
          %v358 = vshrl.u32 %v357, 7
          %v359 = vsub.s32 %v356, %v358
          %v360 = vrot.slane %v346, %v359
          %v361 = vcombine.high %v353, %v353
          %v362 = vcombine.high %v360, %v360
          %v363 = vcombine.high %v266, %v266
          %v365 = vunpack.c.l.s4 1983009808
          %v366 = vunpack.c.0.s8 %v365
          %v367 = vlaneseq
          %v368 = vshrl.u32 %v367, 7
          %v369 = vsub.s32 %v366, %v368
          %v370 = vrot.slane %v266, %v369
          %v372 = vunpack.c.l.s4 1983009808
          %v373 = vunpack.c.0.s8 %v372
          %v374 = vlaneseq
          %v375 = vshrl.u32 %v374, 7
          %v376 = vsub.s32 %v373, %v375
          %v377 = vrot.slane %v363, %v376
          %v378 = vcombine.high %v370, %v370
          %v379 = vcombine.high %v377, %v377
          %v380 = vcombine.high %v267, %v267
          %v382 = vunpack.c.l.s4 1983009808
          %v383 = vunpack.c.0.s8 %v382
          %v384 = vlaneseq
          %v385 = vshrl.u32 %v384, 7
          %v386 = vsub.s32 %v383, %v385
          %v387 = vrot.slane %v267, %v386
          %v389 = vunpack.c.l.s4 1983009808
          %v390 = vunpack.c.0.s8 %v389
          %v391 = vlaneseq
          %v392 = vshrl.u32 %v391, 7
          %v393 = vsub.s32 %v390, %v392
          %v394 = vrot.slane %v380, %v393
          %v395 = vcombine.high %v387, %v387
          %v396 = vcombine.high %v394, %v394
          %v397 = vcombine.high %v268, %v268
          %v399 = vunpack.c.l.s4 1983009808
          %v400 = vunpack.c.0.s8 %v399
          %v401 = vlaneseq
          %v402 = vshrl.u32 %v401, 7
          %v403 = vsub.s32 %v400, %v402
          %v404 = vrot.slane %v268, %v403
          %v406 = vunpack.c.l.s4 1983009808
          %v407 = vunpack.c.0.s8 %v406
          %v408 = vlaneseq
          %v409 = vshrl.u32 %v408, 7
          %v410 = vsub.s32 %v407, %v409
          %v411 = vrot.slane %v397, %v410
          %v412 = vcombine.high %v404, %v404
          %v413 = vcombine.high %v411, %v411
          %v414 = vcombine.high %v269, %v269
          %v416 = vunpack.c.l.s4 1983009808
          %v417 = vunpack.c.0.s8 %v416
          %v418 = vlaneseq
          %v419 = vshrl.u32 %v418, 7
          %v420 = vsub.s32 %v417, %v419
          %v421 = vrot.slane %v269, %v420
          %v423 = vunpack.c.l.s4 1983009808
          %v424 = vunpack.c.0.s8 %v423
          %v425 = vlaneseq
          %v426 = vshrl.u32 %v425, 7
          %v427 = vsub.s32 %v424, %v426
          %v428 = vrot.slane %v414, %v427
          %v429 = vcombine.high %v421, %v421
          %v453 = vsel %vm300, %v336, 0.0
          %v454 = vsel %vm301, %v344, 0.0
          %v455 = vsel %vm302, %v343, 0.0
          %v456 = vsel %vm303, %v345, 0.0
          %v457 = vsel %vm304, %v353, 0.0
          %v458 = vsel %vm305, %v361, 0.0
          %v459 = vsel %vm306, %v360, 0.0
          %v460 = vsel %vm307, %v362, 0.0
          %v461 = vsel %vm308, %v370, 0.0
          %v462 = vsel %vm309, %v378, 0.0
          %v463 = vsel %vm310, %v377, 0.0
          %v464 = vsel %vm311, %v379, 0.0
          %v465 = vsel %vm312, %v387, 0.0
          %v466 = vsel %vm313, %v395, 0.0
          %v467 = vsel %vm314, %v394, 0.0
          %v468 = vsel %vm315, %v396, 0.0
          %v469 = vsel %vm316, %v404, 0.0
          %v470 = vsel %vm317, %v412, 0.0
          %v471 = vsel %vm318, %v411, 0.0
          %v472 = vsel %vm319, %v413, 0.0
          %v473 = vsel %vm320, %v421, 0.0
          %v474 = vsel %vm321, %v429, 0.0
          %v475 = vsel %vm322, %v428, 0.0
          %v476 = vld [vmem:[#allocation2] sm:$0x3]
          %v477 = vadd.f32 %v453, %v454
          %v478 = vadd.f32 %v455, %v456
          %v479 = vadd.f32 %v457, %v458
          %v480 = vadd.f32 %v459, %v460
          %v481 = vadd.f32 %v461, %v462
          %v482 = vadd.f32 %v463, %v464
          %v483 = vadd.f32 %v465, %v466
          %v484 = vadd.f32 %v467, %v468
          %v485 = vadd.f32 %v469, %v470
          %v486 = vadd.f32 %v471, %v472
          %v487 = vadd.f32 %v473, %v474
          %v488 = vadd.f32 %v477, %v478
          %v489 = vadd.f32 %v479, %v480
          %v490 = vadd.f32 %v481, %v482
          %v491 = vadd.f32 %v483, %v484
          %v492 = vadd.f32 %v485, %v486
          %v493 = vadd.f32 %v487, %v475
          %v494 = vadd.f32 %v488, %v489
          %v495 = vadd.f32 %v490, %v491
          %v496 = vadd.f32 %v492, %v493
          %v497 = vadd.f32 %v494, %v495
          %v498 = vadd.f32 %v497, %v496
          %v499 = vadd.f32 %v476, %v498
          %500 = vst [vmem:[#allocation2] sm:$0x3] %v499
        $region44: #{watermark_loss.1} parent=27 // pred_fallthru
          _
        %p501 = pneg %p273
        // Predicated region
        $region45: #{watermark_loss.1} parent=27 // pred_check
          _
        $region46: #{watermark_loss.1} parent=27 // pred_check_branch
          %503 = sbr.rel (%p273) target = $region48
        $region47: #{watermark_loss.1} parent=27 // pred_region
          %v504 = vld [vmem:[#allocation2] sm:$0x3]
          %v506 = vrot.slane %v264, 2
          %v508 = vadd.f32 %v264, %v506
          %v509 = vrot.slane %v264, 4
          %v511 = vrot.slane %v264, 6
          %v513 = vadd.f32 %v509, %v511
          %v515 = vrot.slane %v265, 2
          %v517 = vadd.f32 %v265, %v515
          %v518 = vrot.slane %v265, 4
          %v520 = vrot.slane %v265, 6
          %v522 = vadd.f32 %v518, %v520
          %v524 = vrot.slane %v266, 2
          %v526 = vadd.f32 %v266, %v524
          %v527 = vrot.slane %v266, 4
          %v529 = vrot.slane %v266, 6
          %v531 = vadd.f32 %v527, %v529
          %v533 = vrot.slane %v267, 2
          %v535 = vadd.f32 %v267, %v533
          %v536 = vrot.slane %v267, 4
          %v538 = vrot.slane %v267, 6
          %v540 = vadd.f32 %v536, %v538
          %v542 = vrot.slane %v268, 2
          %v544 = vadd.f32 %v268, %v542
          %v545 = vrot.slane %v268, 4
          %v547 = vrot.slane %v268, 6
          %v549 = vadd.f32 %v545, %v547
          %v551 = vrot.slane %v269, 2
          %v553 = vadd.f32 %v269, %v551
          %v554 = vadd.f32 %v508, %v513
          %v555 = vadd.f32 %v517, %v522
          %v556 = vadd.f32 %v526, %v531
          %v557 = vadd.f32 %v535, %v540
          %v558 = vadd.f32 %v544, %v549
          %v559 = vrot.slane %v269, 4
          %v561 = vadd.f32 %v553, %v559
          %v562 = vadd.f32 %v554, %v555
          %v563 = vadd.f32 %v556, %v557
          %v564 = vadd.f32 %v558, %v561
          %v565 = vadd.f32 %v562, %v563
          %v566 = vadd.f32 %v565, %v564
          %v567 = vadd.f32 %v504, %v566
          %568 = vst [vmem:[#allocation2] sm:$0x3] %v567
        $region48: #{watermark_loss.1} parent=27 // pred_fallthru
          _
        // Predicated region
        $region49: #{watermark_loss.1} parent=27 // pred_check
          %p569 = pneg %p271
        $region50: #{watermark_loss.1} parent=27 // pred_check_branch
          %571 = sbr.rel (%p569) target = $region52
        $region51: #{watermark_loss.1} parent=27 // pred_region
          %v572 = vld [vmem:[#allocation2] sm:$0x3]
          %vm573 = vcmask 1041408
          %v574 = vsel %vm573, %v572, 0.0
          %v575 = vrot.slane %v574, 4
          %v576 = vadd.f32 %v574, %v575
          %v577 = vrot.slane %v576, 2
          %v578 = vadd.f32 %v576, %v577
          %v579 = vrot.slane %v578, 1
          %v580 = vadd.f32 %v578, %v579
          %581 = vst [vmem:[#allocation8] sm:$0x1] %v580
        $region52: #{watermark_loss.1} parent=27 // pred_fallthru
          _
        // Predicated region
        $region53: #{watermark_loss.1} parent=27 // pred_check
          %p582 = pneg %p110
        $region54: #{watermark_loss.1} parent=27 // pred_check_branch
          %584 = sbr.rel (%p582) target = $region56
        $region55: #{watermark_loss.1} parent=27 // pred_region
          %s586 = ssub.s32 16, 16
          %587 = vsyncadd [#allocation5], %s586
          %s588 = smul.addr %s24, 16
          %s589 = scalar_lea.hbm %s2, %s588
          %s591 = sshll.u32 [#allocation8], 4
          %s592 = int_to_ptr.vmem [resolvable:$true] %s591
          %594 = dma.vmem_to_hbm [thread:$0]  %s592, 16, %s589, [#allocation5]
        $region56: #{watermark_loss.1} parent=27 // pred_fallthru
          _
        // Predicated region
        $region57: #{watermark_loss.1} parent=27 // pred_check
          %p595 = pneg %p110
        $region58: #{watermark_loss.1} parent=27 // pred_check_branch
          %597 = sbr.rel (%p595) target = $region60
        $region59: #{watermark_loss.1} parent=27 // pred_region
          %598 = dma.done [#allocation5], 16
        $region60: #{watermark_loss.1} parent=27 // pred_fallthru
          _
      $region28: #{watermark_loss.1} parent=5 // pred_fallthru
        _
      %p599 = scmp.le.s32.totalorder 2, %s15
      // Predicated region
      $region61: #{watermark_loss.1} parent=5 // pred_check
        %p600 = pneg %p599
      $region62: #{watermark_loss.1} parent=5 // pred_check_branch
        %602 = sbr.rel (%p600) target = $region64
      $region63: #{watermark_loss.1} parent=5 // pred_region
        %s603 = ssub.s32 %s15, 2
      $region64: #{watermark_loss.1} parent=5 // pred_fallthru
        _
    $region6: #{watermark_loss.1} parent=1 // loop_footer
      %s19 = sadd.s32 1, %s15
    $region7: #{watermark_loss.1} parent=1 // loop_footer_branch
      %14 = sbr.rel target = $region3
    $region8: #{watermark_loss.1} parent=1 // loop_exit
      _
    %604 = vsyncpa [#allocation4], 1
    %s605 = scalar_lea.sflag [#allocation4], 1
    %606 = vsyncpa %s605, 1
    %607 = vsyncpa [#allocation7], 1
    %s608 = scalar_lea.sflag [#allocation7], 1
    %609 = vsyncpa %s608, 1
    %610 = vsyncpa [#allocation5], 1
    %s611 = scalar_lea.sflag [#allocation5], 1
    %612 = vsyncpa %s611, 1

</llo_original>
